<compile_context>
chip_gen: v6e
topology: v6e:2x2x1
jax: 0.10.0
libtpu: 0.0.40
codegen_flags: <defaults>
</compile_context>

<pallas_src>
import functools

import jax
import jax.numpy as jnp
from jax import lax
from jax.experimental import pallas as pl
from jax.experimental.pallas import tpu as pltpu


def _round_up(a, b):
    return (a + b - 1) // b * b


def _num_tensorcores():
    """2 for chips with two TensorCores per device (v4/v5p megacore, v7x)."""
    try:
        kind = jax.devices()[0].device_kind.lower()
    except Exception:
        return 1
    if ("v7" in kind) or ("v4" in kind) or ("v5p" in kind):
        return 2
    return 1


def _vmem_limit_bytes():
    """Generation-aware scoped-VMEM request: ~48 MiB on v7x, 64 MiB on v5e/v6e."""
    try:
        cap = int(pltpu.get_tpu_info().vmem_capacity_bytes)
    except Exception:
        cap = 64 * 1024 * 1024
    return int(min(64 * 1024 * 1024, (3 * cap) // 4))


def _mine_kernel(xp_ref, yp_ref, ysp_ref, w1x_ref, w1y_ref, b1_ref, w2_ref, b2_ref,
                 out_ref, acc_t0_ref, acc_e1_ref, *, n_valid, pack):
    s = pl.program_id(0)          # split axis ("parallel"; megacore / v7x)
    t = pl.program_id(1)          # tile-within-split axis ("arbitrary"; reduction)
    n_t = pl.num_programs(1)

    @pl.when(t == 0)
    def _init():
        acc_t0_ref[...] = jnp.zeros_like(acc_t0_ref)
        acc_e1_ref[...] = jnp.zeros_like(acc_e1_ref)

    tile_rows = xp_ref.shape[0]
    blk = s * n_t + t
    is_tail = blk == pl.num_programs(0) * n_t - 1

    b1 = b1_ref[...]                                                 # (1, pack*H)

    # Layer 1 (MXU): block-diagonal weights process `pack` samples per row.
    # x @ w1x is shared between the T0 (y) and T1 (y_shuffle) branches.
    xw = jnp.dot(xp_ref[...], w1x_ref[...], preferred_element_type=jnp.float32)
    h0 = jnp.maximum(
        xw + jnp.dot(yp_ref[...], w1y_ref[...],
                     preferred_element_type=jnp.float32) + b1, 0.0)  # (TR, pack*H)
    h1 = jnp.maximum(
        xw + jnp.dot(ysp_ref[...], w1y_ref[...],
                     preferred_element_type=jnp.float32) + b1, 0.0)  # (TR, pack*H)

    # Layer 2 (MXU): block-diagonal (pack*H, pack) weight -> per-sample logits.
    # b2 is folded out of the T0 branch (re-added once in the wrapper).
    t0 = jnp.dot(h0, w2_ref[...], preferred_element_type=jnp.float32)       # (TR, pack)
    t1 = jnp.dot(h1, w2_ref[...], preferred_element_type=jnp.float32) + b2_ref[...]
    e1 = jnp.exp(t1)                                                        # (TR, pack)

    # Interior tiles: unmasked accumulation (fast path, no mask cost).
    @pl.when(jnp.logical_not(is_tail))
    def _acc_full():
        acc_t0_ref[...] += jnp.sum(t0, axis=0, keepdims=True)
        acc_e1_ref[...] += jnp.sum(e1, axis=0, keepdims=True)

    # Tail tile only: mask samples past n_valid.  This covers both the <pack
    # zero-padded rows and any out-of-bounds garbage of a partial last block.
    # jnp.where (select), not multiply, so Inf/NaN garbage cannot poison sums.
    @pl.when(is_tail)
    def _acc_tail():
        row = lax.broadcasted_iota(jnp.int32, (tile_rows, pack), 0)
        grp = lax.broadcasted_iota(jnp.int32, (tile_rows, pack), 1)
        sample = (blk * tile_rows + row) * pack + grp
        valid = sample < n_valid
        acc_t0_ref[...] += jnp.sum(jnp.where(valid, t0, 0.0), axis=0, keepdims=True)
        acc_e1_ref[...] += jnp.sum(jnp.where(valid, e1, 0.0), axis=0, keepdims=True)

    @pl.when(t == n_t - 1)
    def _finalize():
        s0 = jnp.sum(acc_t0_ref[...])          # sum_i h0_i @ w2  (b2 folded out)
        s1 = jnp.sum(acc_e1_ref[...])          # sum_i exp(T1_i)
        r = lax.broadcasted_iota(jnp.int32, out_ref.shape, 0)
        c = lax.broadcasted_iota(jnp.int32, out_ref.shape, 1)
        out_ref[...] = jnp.where((r == 0) & (c == 0), s0,
                                 jnp.where((r == 0) & (c == 1), s1, 0.0))


def mine_forward(x_samples, y_samples, w1, b1, w2, b2, shuffle_key, *,
                 tile_rows=None, num_splits=None):
    """MINE lower bound.  x_samples: (N, x_dim), y_samples: (N, y_dim).

    Weights are (in_features, out_features), i.e. transposed vs nn.Linear.weight.
    """
    n, x_dim = x_samples.shape
    y_dim = y_samples.shape[1]
    hidden = w1.shape[1]

    # torch.randint(sample_size, (sample_size,)) -> sampling with replacement.
    random_index = jax.random.randint(shuffle_key, (n,), 0, n)
    y_shuffle = y_samples[random_index]
    # TODO(synk): the gather still costs one extra HBM pass over y; it could be
    # fused via PrefetchScalarGridSpec + grouped in-kernel row DMAs.

    x = x_samples.astype(jnp.float32)
    y = y_samples.astype(jnp.float32)
    ys = y_shuffle.astype(jnp.float32)

    # Lane-packing factor: pack samples per row so DMA / MXU / VPU run lane-dense.
    pack = 1
    max_feat = max(x_dim, y_dim, 1)
    while (pack * 2 <= 8 and pack * 2 * max_feat <= 128
           and (pack * 2) ** 2 * (x_dim + y_dim) * hidden * 4 <= 8 * 1024 * 1024):
        pack *= 2

    n_pad = _round_up(n, pack)
    if n_pad != n:
        # Only when N % pack != 0; adds < pack zero rows (tail-masked in-kernel).
        pad = n_pad - n
        x = jnp.pad(x, ((0, pad), (0, 0)))
        y = jnp.pad(y, ((0, pad), (0, 0)))
        ys = jnp.pad(ys, ((0, pad), (0, 0)))
    n_rows = n_pad // pack

    # Contiguous row-major reshape: no data movement.
    xp = x.reshape(n_rows, pack * x_dim)
    yp = y.reshape(n_rows, pack * y_dim)
    ysp = ys.reshape(n_rows, pack * y_dim)

    # Block-diagonal / tiled weights so one matmul handles `pack` samples.
    eye_p = jnp.eye(pack, dtype=jnp.float32)
    w1f = w1.astype(jnp.float32)
    w1x_big = jnp.kron(eye_p, w1f[:x_dim])                       # (pack*x_dim, pack*H)
    w1y_big = jnp.kron(eye_p, w1f[x_dim:])                       # (pack*y_dim, pack*H)
    b1_big = jnp.tile(b1.reshape(1, hidden).astype(jnp.float32), (1, pack))
    w2_big = jnp.kron(eye_p, w2.reshape(hidden, 1).astype(jnp.float32))  # (pack*H, pack)
    b2_2d = b2.reshape(1, 1).astype(jnp.float32)

    vmem_limit = _vmem_limit_bytes()

    if tile_rows is None:
        # Per-row VMEM cost (lane-padded to 128): double-buffered streamed inputs
        # plus layer-1/2 temporaries; leave headroom for resident weights etc.
        def _lane_bytes(d):
            return _round_up(max(d, 1), 128) * 4
        per_row = (2 * (_lane_bytes(pack * x_dim) + 2 * _lane_bytes(pack * y_dim))
                   + 5 * _lane_bytes(pack * hidden) + 4 * _lane_bytes(pack))
        budget = max(vmem_limit - 12 * 1024 * 1024, 4 * 1024 * 1024)
        tile_rows = max(8, min(2048, (budget // per_row) // 8 * 8))
    if n_rows <= tile_rows:
        tile_rows = n_rows                       # whole problem in one tile

    total_tiles = -(-n_rows // tile_rows)

    # 2-way "parallel" split only on 2-TensorCore chips and only when each split
    # gets at least 4 tiles; otherwise a single serial reduction axis.
    if num_splits is None:
        num_splits = _num_tensorcores()
    num_splits = max(1, int(num_splits))
    if num_splits > 1 and (total_tiles % num_splits != 0
                           or total_tiles // num_splits < 4):
        num_splits = 1
    tiles_per_split = total_tiles // num_splits

    kernel = functools.partial(_mine_kernel, n_valid=n, pack=pack)

    def row_spec(width):
        return pl.BlockSpec((tile_rows, width),
                            lambda s, t: (s * tiles_per_split + t, 0))

    def const_spec(shape):
        return pl.BlockSpec(shape, lambda s, t: (0, 0))

    partials = pl.pallas_call(
        kernel,
        out_shape=jax.ShapeDtypeStruct((num_splits * 8, 128), jnp.float32),
        grid=(num_splits, tiles_per_split),
        in_specs=[
            row_spec(pack * x_dim),                        # x (packed)
            row_spec(pack * y_dim),                        # y (packed)
            row_spec(pack * y_dim),                        # y_shuffle (packed)
            const_spec((pack * x_dim, pack * hidden)),     # w1x block-diag (resident)
            const_spec((pack * y_dim, pack * hidden)),     # w1y block-diag (resident)
            const_spec((1, pack * hidden)),                # b1 tiled
            const_spec((pack * hidden, pack)),             # w2 block-diag (resident)
            const_spec((1, 1)),                            # b2
        ],
        out_specs=pl.BlockSpec((8, 128), lambda s, t: (s, 0)),
        scratch_shapes=[
            pltpu.VMEM((1, pack), jnp.float32),            # partial sum of T0 logits
            pltpu.VMEM((1, pack), jnp.float32),            # partial sum of exp(T1)
        ],
        compiler_params=pltpu.CompilerParams(
            dimension_semantics=("parallel", "arbitrary"),
            vmem_limit_bytes=vmem_limit,
        ),
    )(xp, yp, ysp, w1x_big, w1y_big, b1_big, w2_big, b2_2d)

    parts = partials.reshape(num_splits, 8, 128)
    sum_t0 = jnp.sum(parts[:, 0, 0])            # sum_i h0_i @ w2   (no b2 yet)
    sum_e1 = jnp.sum(parts[:, 0, 1])            # sum_i exp(T1_i)
    n_f = jnp.float32(n)
    mean_t0 = sum_t0 / n_f + b2.reshape(()).astype(jnp.float32)
    mean_exp_t1 = sum_e1 / n_f
    # NOTE: accumulating exp(T1) directly matches the PyTorch reference; a
    # running-max log-sum-exp would be more robust for very large |T1|.
    return mean_t0 - jnp.log(mean_exp_t1)


def _reference_forward(x, y, w1, b1, w2, b2, shuffle_key):
    n = y.shape[0]
    idx = jax.random.randint(shuffle_key, (n,), 0, n)
    y_shuf = y[idx]
    xy0 = jnp.concatenate([x, y], axis=-1).astype(jnp.float32)
    xy1 = jnp.concatenate([x, y_shuf], axis=-1).astype(jnp.float32)
    t0 = jnp.maximum(xy0 @ w1 + b1, 0.0) @ w2 + b2
    t1 = jnp.maximum(xy1 @ w1 + b1, 0.0) @ w2 + b2
    return jnp.mean(t0) - jnp.log(jnp.mean(jnp.exp(t1)))


if __name__ == "__main__":
    X_DIM, Y_DIM, HIDDEN = 16, 16, 32
    D = X_DIM + Y_DIM

    key = jax.random.PRNGKey(0)
    kx, ky, kw1, kb1, kw2, kb2, kshuf = jax.random.split(key, 7)

    # Deterministic params mimicking nn.Linear's uniform(-1/sqrt(fan_in), .) init.
    bound1 = 1.0 / (D ** 0.5)
    w1 = jax.random.uniform(kw1, (D, HIDDEN), jnp.float32, -bound1, bound1)
    b1 = jax.random.uniform(kb1, (HIDDEN,), jnp.float32, -bound1, bound1)
    bound2 = 1.0 / (HIDDEN ** 0.5)
    w2 = jax.random.uniform(kw2, (HIDDEN, 1), jnp.float32, -bound2, bound2)
    b2 = jax.random.uniform(kb2, (1,), jnp.float32, -bound2, bound2)

    # Test 1: tiny batch, single tile, single split.
    N = 8
    x = jax.random.normal(kx, (N, X_DIM), dtype=jnp.float32)
    y = jax.random.normal(ky, (N, Y_DIM), dtype=jnp.float32)
    lb = jax.block_until_ready(mine_forward(x, y, w1, b1, w2, b2, kshuf))
    ref = _reference_forward(x, y, w1, b1, w2, b2, kshuf)
    assert jnp.allclose(lb, ref, atol=1e-4, rtol=1e-4), (lb, ref)

    # Test 2: N not a multiple of the pack factor, forced small tiles ->
    # multi-tile accumulation, partial last block, tail-only jnp.where mask.
    N2 = 150
    kx2, ky2, ks2 = jax.random.split(jax.random.PRNGKey(1), 3)
    x2 = jax.random.normal(kx2, (N2, X_DIM), dtype=jnp.float32)
    y2 = jax.random.normal(ky2, (N2, Y_DIM), dtype=jnp.float32)
    lb2 = jax.block_until_ready(
        mine_forward(x2, y2, w1, b1, w2, b2, ks2, tile_rows=8))
    ref2 = _reference_forward(x2, y2, w1, b1, w2, b2, ks2)
    assert jnp.allclose(lb2, ref2, atol=1e-4, rtol=1e-4), (lb2, ref2)

    # Test 3: forced 2-way split (v7x/megacore path; runs serially elsewhere).
    N3 = 2000
    kx3, ky3, ks3 = jax.random.split(jax.random.PRNGKey(2), 3)
    x3 = jax.random.normal(kx3, (N3, X_DIM), dtype=jnp.float32)
    y3 = jax.random.normal(ky3, (N3, Y_DIM), dtype=jnp.float32)
    lb3 = jax.block_until_ready(
        mine_forward(x3, y3, w1, b1, w2, b2, ks3, tile_rows=16, num_splits=2))
    ref3 = _reference_forward(x3, y3, w1, b1, w2, b2, ks3)
    assert jnp.allclose(lb3, ref3, atol=1e-4, rtol=1e-4), (lb3, ref3)

    # Test 4: default (large, VMEM-budgeted) tiles on a bigger batch.
    N4 = 4096
    kx4, ky4, ks4 = jax.random.split(jax.random.PRNGKey(3), 3)
    x4 = jax.random.normal(kx4, (N4, X_DIM), dtype=jnp.float32)
    y4 = jax.random.normal(ky4, (N4, Y_DIM), dtype=jnp.float32)
    lb4 = jax.block_until_ready(mine_forward(x4, y4, w1, b1, w2, b2, ks4))
    ref4 = _reference_forward(x4, y4, w1, b1, w2, b2, ks4)
    assert jnp.allclose(lb4, ref4, atol=1e-4, rtol=1e-4), (lb4, ref4)

    print("KERNEL_OK")
</pallas_src>

<mosaic_0001>
module attributes {stable_mosaic.version = 11 : i64} {
  func.func @_mine_kernel(%arg0: i32, %arg1: i32, %arg2: memref<1x128xf32, #tpu.memory_space<vmem>>, %arg3: memref<1x128xf32, #tpu.memory_space<vmem>>, %arg4: memref<1x128xf32, #tpu.memory_space<vmem>>, %arg5: memref<128x256xf32, #tpu.memory_space<vmem>>, %arg6: memref<128x256xf32, #tpu.memory_space<vmem>>, %arg7: memref<1x256xf32, #tpu.memory_space<vmem>>, %arg8: memref<256x8xf32, #tpu.memory_space<vmem>>, %arg9: memref<1x1xf32, #tpu.memory_space<vmem>>, %arg10: memref<8x128xf32, #tpu.memory_space<vmem>>, %arg11: memref<1x8xf32, #tpu.memory_space<vmem>>, %arg12: memref<1x8xf32, #tpu.memory_space<vmem>>) attributes {dimension_semantics = [#tpu.dimension_semantics<parallel>, #tpu.dimension_semantics<arbitrary>], iteration_bounds = array<i64: 1, 1>, scalar_prefetch = 0 : i64, scratch_operands = 2 : i64, tpu.core_type = #tpu.core_type<tc>, window_params = [{transform_indices = @transform_0, window_bounds = array<i64: 1, 128>}, {transform_indices = @transform_1, window_bounds = array<i64: 1, 128>}, {transform_indices = @transform_2, window_bounds = array<i64: 1, 128>}, {pipeline_mode = #tpu.pipeline_mode<synchronous>, transform_indices = @transform_3, window_bounds = array<i64: 128, 256>}, {pipeline_mode = #tpu.pipeline_mode<synchronous>, transform_indices = @transform_4, window_bounds = array<i64: 128, 256>}, {pipeline_mode = #tpu.pipeline_mode<synchronous>, transform_indices = @transform_5, window_bounds = array<i64: 1, 256>}, {pipeline_mode = #tpu.pipeline_mode<synchronous>, transform_indices = @transform_6, window_bounds = array<i64: 256, 8>}, {pipeline_mode = #tpu.pipeline_mode<synchronous>, transform_indices = @transform_7, window_bounds = array<i64: 1, 1>}, {transform_indices = @transform_8, window_bounds = array<i64: 8, 128>}]} {
    %c0_i32 = arith.constant 0 : i32
    %0 = arith.cmpi eq, %arg1, %c0_i32 : i32
    %1 = arith.extui %0 : i1 to i32
    %c0_i32_0 = arith.constant 0 : i32
    %2 = arith.cmpi ne, %1, %c0_i32_0 : i32
    scf.if %2 {
      %cst_31 = arith.constant 0.000000e+00 : f32
      %40 = vector.broadcast %cst_31 : f32 to vector<1x8xf32>
      %c0_32 = arith.constant 0 : index
      %c0_33 = arith.constant 0 : index
      %41 = vector.load %arg11[%c0_32, %c0_33] : memref<1x8xf32, #tpu.memory_space<vmem>>, vector<1x8xf32>
      tpu.vector_store %arg11[%c0_32, %c0_33], %40 {strides = array<i32>} : memref<1x8xf32, #tpu.memory_space<vmem>>, vector<1x8xf32>,
      %cst_34 = arith.constant 0.000000e+00 : f32
      %42 = vector.broadcast %cst_34 : f32 to vector<1x8xf32>
      %c0_35 = arith.constant 0 : index
      %c0_36 = arith.constant 0 : index
      %43 = vector.load %arg12[%c0_35, %c0_36] : memref<1x8xf32, #tpu.memory_space<vmem>>, vector<1x8xf32>
      tpu.vector_store %arg12[%c0_35, %c0_36], %42 {strides = array<i32>} : memref<1x8xf32, #tpu.memory_space<vmem>>, vector<1x8xf32>,
    } else {
    }
    %c1_i32 = arith.constant 1 : i32
    %3 = arith.muli %arg0, %c1_i32 : i32
    %4 = arith.addi %3, %arg1 : i32
    %c0_i32_1 = arith.constant 0 : i32
    %5 = arith.cmpi eq, %4, %c0_i32_1 : i32
    %c0 = arith.constant 0 : index
    %c0_2 = arith.constant 0 : index
    %6 = vector.load %arg7[%c0, %c0_2] : memref<1x256xf32, #tpu.memory_space<vmem>>, vector<1x256xf32>
    %c0_3 = arith.constant 0 : index
    %c0_4 = arith.constant 0 : index
    %7 = vector.load %arg2[%c0_3, %c0_4] : memref<1x128xf32, #tpu.memory_space<vmem>>, vector<1x128xf32>
    %c0_5 = arith.constant 0 : index
    %c0_6 = arith.constant 0 : index
    %8 = vector.load %arg5[%c0_5, %c0_6] : memref<128x256xf32, #tpu.memory_space<vmem>>, vector<128x256xf32>
    %cst = arith.constant dense<0.000000e+00> : vector<1x256xf32>
    %9 = tpu.matmul %7, %8, %cst {dimension_numbers = #tpu.dot_dimension_numbers<[1], [0], [0], [1], [0, 0, 1, 1], [], []>} : vector<1x128xf32>, vector<128x256xf32>, vector<1x256xf32> -> vector<1x256xf32>
    %c0_7 = arith.constant 0 : index
    %c0_8 = arith.constant 0 : index
    %10 = vector.load %arg3[%c0_7, %c0_8] : memref<1x128xf32, #tpu.memory_space<vmem>>, vector<1x128xf32>
    %c0_9 = arith.constant 0 : index
    %c0_10 = arith.constant 0 : index
    %11 = vector.load %arg6[%c0_9, %c0_10] : memref<128x256xf32, #tpu.memory_space<vmem>>, vector<128x256xf32>
    %cst_11 = arith.constant dense<0.000000e+00> : vector<1x256xf32>
    %12 = tpu.matmul %10, %11, %cst_11 {dimension_numbers = #tpu.dot_dimension_numbers<[1], [0], [0], [1], [0, 0, 1, 1], [], []>} : vector<1x128xf32>, vector<128x256xf32>, vector<1x256xf32> -> vector<1x256xf32>
    %13 = arith.addf %9, %12 : vector<1x256xf32>
    %14 = arith.addf %13, %6 : vector<1x256xf32>
    %cst_12 = arith.constant 0.000000e+00 : f32
    %15 = vector.broadcast %cst_12 : f32 to vector<1x256xf32>
    %16 = arith.maximumf %14, %15 : vector<1x256xf32>
    %c0_13 = arith.constant 0 : index
    %c0_14 = arith.constant 0 : index
    %17 = vector.load %arg4[%c0_13, %c0_14] : memref<1x128xf32, #tpu.memory_space<vmem>>, vector<1x128xf32>
    %c0_15 = arith.constant 0 : index
    %c0_16 = arith.constant 0 : index
    %18 = vector.load %arg6[%c0_15, %c0_16] : memref<128x256xf32, #tpu.memory_space<vmem>>, vector<128x256xf32>
    %cst_17 = arith.constant dense<0.000000e+00> : vector<1x256xf32>
    %19 = tpu.matmul %17, %18, %cst_17 {dimension_numbers = #tpu.dot_dimension_numbers<[1], [0], [0], [1], [0, 0, 1, 1], [], []>} : vector<1x128xf32>, vector<128x256xf32>, vector<1x256xf32> -> vector<1x256xf32>
    %20 = arith.addf %9, %19 : vector<1x256xf32>
    %21 = arith.addf %20, %6 : vector<1x256xf32>
    %cst_18 = arith.constant 0.000000e+00 : f32
    %22 = vector.broadcast %cst_18 : f32 to vector<1x256xf32>
    %23 = arith.maximumf %21, %22 : vector<1x256xf32>
    %c0_19 = arith.constant 0 : index
    %c0_20 = arith.constant 0 : index
    %24 = vector.load %arg8[%c0_19, %c0_20] : memref<256x8xf32, #tpu.memory_space<vmem>>, vector<256x8xf32>
    %cst_21 = arith.constant dense<0.000000e+00> : vector<1x8xf32>
    %25 = tpu.matmul %16, %24, %cst_21 {dimension_numbers = #tpu.dot_dimension_numbers<[1], [0], [0], [1], [0, 0, 1, 1], [], []>} : vector<1x256xf32>, vector<256x8xf32>, vector<1x8xf32> -> vector<1x8xf32>
    %c0_22 = arith.constant 0 : index
    %c0_23 = arith.constant 0 : index
    %26 = vector.load %arg8[%c0_22, %c0_23] : memref<256x8xf32, #tpu.memory_space<vmem>>, vector<256x8xf32>
    %cst_24 = arith.constant dense<0.000000e+00> : vector<1x8xf32>
    %27 = tpu.matmul %23, %26, %cst_24 {dimension_numbers = #tpu.dot_dimension_numbers<[1], [0], [0], [1], [0, 0, 1, 1], [], []>} : vector<1x256xf32>, vector<256x8xf32>, vector<1x8xf32> -> vector<1x8xf32>
    %c0_25 = arith.constant 0 : index
    %c0_26 = arith.constant 0 : index
    %28 = vector.load %arg9[%c0_25, %c0_26] : memref<1x1xf32, #tpu.memory_space<vmem>>, vector<1x1xf32>
    %29 = vector.broadcast %28 : vector<1x1xf32> to vector<1x8xf32>
    %30 = arith.addf %27, %29 : vector<1x8xf32>
    %31 = math.exp %30 : vector<1x8xf32>
    %true = arith.constant true
    %32 = arith.xori %5, %true : i1
    %33 = arith.extui %32 : i1 to i32
    %c0_i32_27 = arith.constant 0 : i32
    %34 = arith.cmpi ne, %33, %c0_i32_27 : i32
    scf.if %34 {
      %c0_31 = arith.constant 0 : index
      %c0_32 = arith.constant 0 : index
      %40 = vector.load %arg11[%c0_31, %c0_32] : memref<1x8xf32, #tpu.memory_space<vmem>>, vector<1x8xf32>
      %cst_33 = arith.constant dense<0.000000e+00> : vector<8xf32>
      %41 = vector.multi_reduction <add>, %25, %cst_33 [0] : vector<1x8xf32> to vector<8xf32>
      %42 = vector.shape_cast %41 : vector<8xf32> to vector<1x8xf32>
      %43 = arith.addf %40, %42 : vector<1x8xf32>
      %c0_34 = arith.constant 0 : index
      %c0_35 = arith.constant 0 : index
      %44 = vector.load %arg11[%c0_34, %c0_35] : memref<1x8xf32, #tpu.memory_space<vmem>>, vector<1x8xf32>
      tpu.vector_store %arg11[%c0_34, %c0_35], %43 {strides = array<i32>} : memref<1x8xf32, #tpu.memory_space<vmem>>, vector<1x8xf32>,
      %c0_36 = arith.constant 0 : index
      %c0_37 = arith.constant 0 : index
      %45 = vector.load %arg12[%c0_36, %c0_37] : memref<1x8xf32, #tpu.memory_space<vmem>>, vector<1x8xf32>
      %cst_38 = arith.constant dense<0.000000e+00> : vector<8xf32>
      %46 = vector.multi_reduction <add>, %31, %cst_38 [0] : vector<1x8xf32> to vector<8xf32>
      %47 = vector.shape_cast %46 : vector<8xf32> to vector<1x8xf32>
      %48 = arith.addf %45, %47 : vector<1x8xf32>
      %c0_39 = arith.constant 0 : index
      %c0_40 = arith.constant 0 : index
      %49 = vector.load %arg12[%c0_39, %c0_40] : memref<1x8xf32, #tpu.memory_space<vmem>>, vector<1x8xf32>
      tpu.vector_store %arg12[%c0_39, %c0_40], %48 {strides = array<i32>} : memref<1x8xf32, #tpu.memory_space<vmem>>, vector<1x8xf32>,
    } else {
    }
    %35 = arith.extui %5 : i1 to i32
    %c0_i32_28 = arith.constant 0 : i32
    %36 = arith.cmpi ne, %35, %c0_i32_28 : i32
    scf.if %36 {
      %40 = tpu.iota {dimensions = array<i32: 0>} : vector<1x8xi32>
      %41 = tpu.iota {dimensions = array<i32: 1>} : vector<1x8xi32>
      %c1_i32_31 = arith.constant 1 : i32
      %42 = arith.muli %4, %c1_i32_31 : i32
      %43 = vector.broadcast %42 : i32 to vector<1x8xi32>
      %44 = arith.addi %43, %40 : vector<1x8xi32>
      %c8_i32 = arith.constant 8 : i32
      %45 = vector.broadcast %c8_i32 : i32 to vector<1x8xi32>
      %46 = arith.muli %44, %45 : vector<1x8xi32>
      %47 = arith.addi %46, %41 : vector<1x8xi32>
      %c8_i32_32 = arith.constant 8 : i32
      %48 = vector.broadcast %c8_i32_32 : i32 to vector<1x8xi32>
      %49 = arith.cmpi slt, %47, %48 : vector<1x8xi32>
      %c0_33 = arith.constant 0 : index
      %c0_34 = arith.constant 0 : index
      %50 = vector.load %arg11[%c0_33, %c0_34] : memref<1x8xf32, #tpu.memory_space<vmem>>, vector<1x8xf32>
      %cst_35 = arith.constant 0.000000e+00 : f32
      %51 = vector.broadcast %cst_35 : f32 to vector<1x8xf32>
      %52 = arith.select %49, %25, %51 : vector<1x8xi1>, vector<1x8xf32>
      %cst_36 = arith.constant dense<0.000000e+00> : vector<8xf32>
      %53 = vector.multi_reduction <add>, %52, %cst_36 [0] : vector<1x8xf32> to vector<8xf32>
      %54 = vector.shape_cast %53 : vector<8xf32> to vector<1x8xf32>
      %55 = arith.addf %50, %54 : vector<1x8xf32>
      %c0_37 = arith.constant 0 : index
      %c0_38 = arith.constant 0 : index
      %56 = vector.load %arg11[%c0_37, %c0_38] : memref<1x8xf32, #tpu.memory_space<vmem>>, vector<1x8xf32>
      tpu.vector_store %arg11[%c0_37, %c0_38], %55 {strides = array<i32>} : memref<1x8xf32, #tpu.memory_space<vmem>>, vector<1x8xf32>,
      %c0_39 = arith.constant 0 : index
      %c0_40 = arith.constant 0 : index
      %57 = vector.load %arg12[%c0_39, %c0_40] : memref<1x8xf32, #tpu.memory_space<vmem>>, vector<1x8xf32>
      %cst_41 = arith.constant 0.000000e+00 : f32
      %58 = vector.broadcast %cst_41 : f32 to vector<1x8xf32>
      %59 = arith.select %49, %31, %58 : vector<1x8xi1>, vector<1x8xf32>
      %cst_42 = arith.constant dense<0.000000e+00> : vector<8xf32>
      %60 = vector.multi_reduction <add>, %59, %cst_42 [0] : vector<1x8xf32> to vector<8xf32>
      %61 = vector.shape_cast %60 : vector<8xf32> to vector<1x8xf32>
      %62 = arith.addf %57, %61 : vector<1x8xf32>
      %c0_43 = arith.constant 0 : index
      %c0_44 = arith.constant 0 : index
      %63 = vector.load %arg12[%c0_43, %c0_44] : memref<1x8xf32, #tpu.memory_space<vmem>>, vector<1x8xf32>
      tpu.vector_store %arg12[%c0_43, %c0_44], %62 {strides = array<i32>} : memref<1x8xf32, #tpu.memory_space<vmem>>, vector<1x8xf32>,
    } else {
    }
    %c0_i32_29 = arith.constant 0 : i32
    %37 = arith.cmpi eq, %arg1, %c0_i32_29 : i32
    %38 = arith.extui %37 : i1 to i32
    %c0_i32_30 = arith.constant 0 : i32
    %39 = arith.cmpi ne, %38, %c0_i32_30 : i32
    scf.if %39 {
      %c0_31 = arith.constant 0 : index
      %c0_32 = arith.constant 0 : index
      %40 = vector.load %arg11[%c0_31, %c0_32] : memref<1x8xf32, #tpu.memory_space<vmem>>, vector<1x8xf32>
      %41 = vector.shape_cast %40 : vector<1x8xf32> to vector<1x1x8xf32>
      %cst_33 = arith.constant dense<0.000000e+00> : vector<1xf32>
      %42 = vector.multi_reduction <add>, %41, %cst_33 [1, 2] : vector<1x1x8xf32> to vector<1xf32>
      %43 = vector.shape_cast %42 : vector<1xf32> to vector<1x1x1xf32>
      %44 = vector.extract %43[0, 0, 0] : f32 from vector<1x1x1xf32>
      %c0_34 = arith.constant 0 : index
      %c0_35 = arith.constant 0 : index
      %45 = vector.load %arg12[%c0_34, %c0_35] : memref<1x8xf32, #tpu.memory_space<vmem>>, vector<1x8xf32>
      %46 = vector.shape_cast %45 : vector<1x8xf32> to vector<1x1x8xf32>
      %cst_36 = arith.constant dense<0.000000e+00> : vector<1xf32>
      %47 = vector.multi_reduction <add>, %46, %cst_36 [1, 2] : vector<1x1x8xf32> to vector<1xf32>
      %48 = vector.shape_cast %47 : vector<1xf32> to vector<1x1x1xf32>
      %49 = vector.extract %48[0, 0, 0] : f32 from vector<1x1x1xf32>
      %50 = tpu.iota {dimensions = array<i32: 0>} : vector<8x128xi32>
      %51 = tpu.iota {dimensions = array<i32: 1>} : vector<8x128xi32>
      %c0_i32_37 = arith.constant 0 : i32
      %52 = vector.broadcast %c0_i32_37 : i32 to vector<8x128xi32>
      %53 = arith.cmpi eq, %50, %52 : vector<8x128xi32>
      %c0_i32_38 = arith.constant 0 : i32
      %54 = vector.broadcast %c0_i32_38 : i32 to vector<8x128xi32>
      %55 = arith.cmpi eq, %51, %54 : vector<8x128xi32>
      %56 = arith.andi %53, %55 : vector<8x128xi1>
      %c0_i32_39 = arith.constant 0 : i32
      %57 = vector.broadcast %c0_i32_39 : i32 to vector<8x128xi32>
      %58 = arith.cmpi eq, %50, %57 : vector<8x128xi32>
      %c1_i32_40 = arith.constant 1 : i32
      %59 = vector.broadcast %c1_i32_40 : i32 to vector<8x128xi32>
      %60 = arith.cmpi eq, %51, %59 : vector<8x128xi32>
      %61 = arith.andi %58, %60 : vector<8x128xi1>
      %cst_41 = arith.constant 0.000000e+00 : f32
      %62 = vector.broadcast %49 : f32 to vector<8x128xf32>
      %63 = vector.broadcast %cst_41 : f32 to vector<8x128xf32>
      %64 = arith.select %61, %62, %63 : vector<8x128xi1>, vector<8x128xf32>
      %65 = vector.broadcast %44 : f32 to vector<8x128xf32>
      %66 = arith.select %56, %65, %64 : vector<8x128xi1>, vector<8x128xf32>
      %c0_42 = arith.constant 0 : index
      %c0_43 = arith.constant 0 : index
      %67 = vector.load %arg10[%c0_42, %c0_43] : memref<8x128xf32, #tpu.memory_space<vmem>>, vector<8x128xf32>
      tpu.vector_store %arg10[%c0_42, %c0_43], %66 {strides = array<i32>} : memref<8x128xf32, #tpu.memory_space<vmem>>, vector<8x128xf32>,
    } else {
    }
    return
  }
  func.func @transform_0(%arg0: i32, %arg1: i32) -> (i32, i32) {
    %c1_i32 = arith.constant 1 : i32
    %0 = arith.muli %arg0, %c1_i32 : i32
    %1 = arith.addi %0, %arg1 : i32
    %c0_i32 = arith.constant 0 : i32
    %c0_i32_0 = arith.constant 0 : i32
    return %1, %c0_i32 : i32, i32
  }
  func.func @transform_1(%arg0: i32, %arg1: i32) -> (i32, i32) {
    %c1_i32 = arith.constant 1 : i32
    %0 = arith.muli %arg0, %c1_i32 : i32
    %1 = arith.addi %0, %arg1 : i32
    %c0_i32 = arith.constant 0 : i32
    %c0_i32_0 = arith.constant 0 : i32
    return %1, %c0_i32 : i32, i32
  }
  func.func @transform_2(%arg0: i32, %arg1: i32) -> (i32, i32) {
    %c1_i32 = arith.constant 1 : i32
    %0 = arith.muli %arg0, %c1_i32 : i32
    %1 = arith.addi %0, %arg1 : i32
    %c0_i32 = arith.constant 0 : i32
    %c0_i32_0 = arith.constant 0 : i32
    return %1, %c0_i32 : i32, i32
  }
  func.func @transform_3(%arg0: i32, %arg1: i32) -> (i32, i32) {
    %c0_i32 = arith.constant 0 : i32
    %c0_i32_0 = arith.constant 0 : i32
    %c0_i32_1 = arith.constant 0 : i32
    return %c0_i32, %c0_i32_0 : i32, i32
  }
  func.func @transform_4(%arg0: i32, %arg1: i32) -> (i32, i32) {
    %c0_i32 = arith.constant 0 : i32
    %c0_i32_0 = arith.constant 0 : i32
    %c0_i32_1 = arith.constant 0 : i32
    return %c0_i32, %c0_i32_0 : i32, i32
  }
  func.func @transform_5(%arg0: i32, %arg1: i32) -> (i32, i32) {
    %c0_i32 = arith.constant 0 : i32
    %c0_i32_0 = arith.constant 0 : i32
    %c0_i32_1 = arith.constant 0 : i32
    return %c0_i32, %c0_i32_0 : i32, i32
  }
  func.func @transform_6(%arg0: i32, %arg1: i32) -> (i32, i32) {
    %c0_i32 = arith.constant 0 : i32
    %c0_i32_0 = arith.constant 0 : i32
    %c0_i32_1 = arith.constant 0 : i32
    return %c0_i32, %c0_i32_0 : i32, i32
  }
  func.func @transform_7(%arg0: i32, %arg1: i32) -> (i32, i32) {
    %c0_i32 = arith.constant 0 : i32
    %c0_i32_0 = arith.constant 0 : i32
    %c0_i32_1 = arith.constant 0 : i32
    return %c0_i32, %c0_i32_0 : i32, i32
  }
  func.func @transform_8(%arg0: i32, %arg1: i32) -> (i32, i32) {
    %c0_i32 = arith.constant 0 : i32
    %c0_i32_0 = arith.constant 0 : i32
    return %arg0, %c0_i32 : i32, i32
  }
}

</mosaic_0001>

<llo_original>
// kernel: tpu_custom_call.1
$region0: #{tpu_custom_call.1}
  #allocation0 [shape = 'u32[]', space=smem, size = 0x4, offset = 0x4, fixed_abs, tag = 'smem constant byte address 0x4 - core index']
  #allocation1 [shape = 'u32[144,128]{1,0:T(1,128)}', space=vmem, size = 0x12000, scoped, tag = 'internal scratch']
  #allocation2 [shape = 'f32[1,8]{1,0:T(1,128)}', space=vmem, size = 0x200, scoped, tag = 'scratch operand']
  #allocation3 [shape = 'f32[1,8]{1,0:T(1,128)}', space=vmem, size = 0x200, scoped, tag = 'scratch operand']
  #allocation4 [shape = 'f32[1,1]{1,0:T(1,128)S(1)}', space=vmem, size = 0x200, scoped, tag = 'scoped memory for tpu_custom_call.1']
  %s0 = inlined_call_operand.vmem [shape: f32[1,128], index: 0, kind: input, shape index: {}]
  %s1 = inlined_call_operand.vmem [shape: f32[1,128], index: 1, kind: input, shape index: {}]
  %s2 = inlined_call_operand.vmem [shape: f32[1,128], index: 2, kind: input, shape index: {}]
  %s3 = inlined_call_operand.vmem [shape: f32[128,256], index: 3, kind: input, shape index: {}]
  %s4 = inlined_call_operand.hbm [shape: f32[128,256], index: 4, kind: input, shape index: {}]
  %s5 = inlined_call_operand.vmem [shape: f32[1,256], index: 5, kind: input, shape index: {}]
  %s6 = inlined_call_operand.vmem [shape: f32[256,8], index: 6, kind: input, shape index: {}]
  %s7 = inlined_call_operand.<no memory space> [shape: f32[1,1], index: 7, kind: input, shape index: {}]
  %s8 = inlined_call_operand.hbm [shape: f32[8,128], index: 8, kind: output, shape index: {}]
  %s9 = sld [smem:[#allocation0]]
  $region62: #{tpu_custom_call.1} parent=0
    _
  %s11 = ssub.s32 1, %s9
  %s12 = scalar_select 0, %s11, %s9
  %v13 = vstv %s7
  %14 = vst [vmem:[#allocation4] sm:$0x1] %v13
  $region1: #{tpu_custom_call.1} parent=0
    #allocation5 [shape = 'u8[131072]{0}', space=vmem, size = 0x20000, scoped, tag = 'input window, operand 4, single buffered']
    #allocation6 [shape = 's32[1]{0}', space=sflag, size = 0x4, scoped, tag = 'scoped memory for tpu_custom_call.1']
    #allocation7 [shape = 's32[1]{0}', space=sflag, size = 0x4, scoped, tag = 'scoped memory for tpu_custom_call.1']
    #allocation8 [shape = 'u8[4096]{0}', space=vmem, size = 0x1000, scoped, tag = 'output window, operand 0, single buffered']
    %15 = vsyncpa [#allocation6], 0
    %16 = vsyncpa [#allocation7], 0
    // Predicated region
    $region2: #{tpu_custom_call.1} parent=1 // pred_check
      _
    $region3: #{tpu_custom_call.1} parent=1 // pred_check_branch
      %18 = sbr.rel (0) target = $region5
    $region4: #{tpu_custom_call.1} parent=1 // pred_region
      %s19 = sadd.s32 0, 0
      %p20 = scmp.lt.s32.totalorder %s19, 0
      %s21 = scalar_select %p20, %s19, 0
      %s22 = scalar_lea.vmem %s0, %s21
      %s23 = sadd.s32 0, 0
    $region5: #{tpu_custom_call.1} parent=1 // pred_fallthru
      _
    // Predicated region
    $region6: #{tpu_custom_call.1} parent=1 // pred_check
      _
    $region7: #{tpu_custom_call.1} parent=1 // pred_check_branch
      %25 = sbr.rel (0) target = $region9
    $region8: #{tpu_custom_call.1} parent=1 // pred_region
      %s26 = sadd.s32 0, 0
      %p27 = scmp.lt.s32.totalorder %s26, 0
      %s28 = scalar_select %p27, %s26, 0
      %s29 = scalar_lea.vmem %s1, %s28
      %s30 = sadd.s32 0, 0
    $region9: #{tpu_custom_call.1} parent=1 // pred_fallthru
      _
    // Predicated region
    $region10: #{tpu_custom_call.1} parent=1 // pred_check
      _
    $region11: #{tpu_custom_call.1} parent=1 // pred_check_branch
      %32 = sbr.rel (0) target = $region13
    $region12: #{tpu_custom_call.1} parent=1 // pred_region
      %s33 = sadd.s32 0, 0
      %p34 = scmp.lt.s32.totalorder %s33, 0
      %s35 = scalar_select %p34, %s33, 0
      %s36 = scalar_lea.vmem %s2, %s35
      %s37 = sadd.s32 0, 0
    $region13: #{tpu_custom_call.1} parent=1 // pred_fallthru
      _
    // Predicated region
    $region14: #{tpu_custom_call.1} parent=1 // pred_check
      _
    $region15: #{tpu_custom_call.1} parent=1 // pred_check_branch
      %39 = sbr.rel (0) target = $region17
    $region16: #{tpu_custom_call.1} parent=1 // pred_region
      _
    $region17: #{tpu_custom_call.1} parent=1 // pred_fallthru
      _
    // Predicated region
    $region18: #{tpu_custom_call.1} parent=1 // pred_check
      _
    $region19: #{tpu_custom_call.1} parent=1 // pred_check_branch
      %41 = sbr.rel (0) target = $region21
    $region20: #{tpu_custom_call.1} parent=1 // pred_region
      %s43 = ssub.s32 4096, 4096
      %44 = vsyncadd [#allocation6], %s43
      %s45 = sshll.u32 [#allocation5], 4
      %s46 = int_to_ptr.vmem [resolvable:$true] %s45
      %51 = dma.hbm_to_vmem [thread:$0]  %s4, 4096, %s46, [#allocation6], 256, 256, 16
    $region21: #{tpu_custom_call.1} parent=1 // pred_fallthru
      _
    // Predicated region
    $region22: #{tpu_custom_call.1} parent=1 // pred_check
      _
    $region23: #{tpu_custom_call.1} parent=1 // pred_check_branch
      %53 = sbr.rel (0) target = $region25
    $region24: #{tpu_custom_call.1} parent=1 // pred_region
      _
    $region25: #{tpu_custom_call.1} parent=1 // pred_fallthru
      _
    // Predicated region
    $region26: #{tpu_custom_call.1} parent=1 // pred_check
      _
    $region27: #{tpu_custom_call.1} parent=1 // pred_check_branch
      %55 = sbr.rel (0) target = $region29
    $region28: #{tpu_custom_call.1} parent=1 // pred_region
      _
    $region29: #{tpu_custom_call.1} parent=1 // pred_fallthru
      _
    // Predicated region
    $region30: #{tpu_custom_call.1} parent=1 // pred_check
      _
    $region31: #{tpu_custom_call.1} parent=1 // pred_check_branch
      %57 = sbr.rel (0) target = $region33
    $region32: #{tpu_custom_call.1} parent=1 // pred_region
      _
    $region33: #{tpu_custom_call.1} parent=1 // pred_fallthru
      _
    // Predicated region
    $region34: #{tpu_custom_call.1} parent=1 // pred_check
      _
    $region35: #{tpu_custom_call.1} parent=1 // pred_check_branch
      %59 = sbr.rel (0) target = $region37
    $region36: #{tpu_custom_call.1} parent=1 // pred_region
      %60 = dma.done [#allocation6], 4096
    $region37: #{tpu_custom_call.1} parent=1 // pred_fallthru
      _
    %s61 = sadd.s32 0, 0
    %p62 = scmp.lt.s32.totalorder %s61, 0
    %s63 = scalar_select %p62, %s61, 0
    %s64 = scalar_lea.vmem %s0, %s63
    %s65 = sadd.s32 0, 0
    %p66 = scmp.lt.s32.totalorder %s65, 0
    %s67 = scalar_select %p66, %s65, 0
    %s68 = scalar_lea.vmem %s1, %s67
    %s69 = sadd.s32 0, 0
    %p70 = scmp.lt.s32.totalorder %s69, 0
    %s71 = scalar_select %p70, %s69, 0
    %s72 = scalar_lea.vmem %s2, %s71
    %s73 = sadd.s32 0, 0
    %p74 = scmp.lt.s32.totalorder %s73, 0
    %s75 = scalar_select %p74, %s73, 0
    %s76 = scalar_lea.vmem %s0, %s75
    %s77 = sadd.s32 0, 0
    %s78 = sadd.s32 0, 0
    %p79 = scmp.lt.s32.totalorder %s78, 0
    %s80 = scalar_select %p79, %s78, 0
    %s81 = scalar_lea.vmem %s1, %s80
    %s82 = sadd.s32 0, 0
    %s83 = sadd.s32 0, 0
    %p84 = scmp.lt.s32.totalorder %s83, 0
    %s85 = scalar_select %p84, %s83, 0
    %s86 = scalar_lea.vmem %s2, %s85
    %s87 = sadd.s32 0, 0
    %p88 = scmp.eq.s32.totalorder 0, 0
    // Predicated region
    $region38: #{tpu_custom_call.1} parent=1 // pred_check
      %p89 = pneg %p88
    $region39: #{tpu_custom_call.1} parent=1 // pred_check_branch
      %91 = sbr.rel (%p89) target = $region41
    $region40: #{tpu_custom_call.1} parent=1 // pred_region
      %vm92 = vcmask 57344
      %93 = vst.msk [vmem:[#allocation2] sm:$0x1] %vm92, 0.0
      %94 = vst.msk [vmem:[#allocation3] sm:$0x1] %vm92, 0.0
    $region41: #{tpu_custom_call.1} parent=1 // pred_fallthru
      _
    %s95 = sadd.s32 0, 0
    %p96 = scmp.eq.s32.totalorder %s95, 0
    %v97 = vld [vmem:[%s5] sm:$0x3]
    %v98 = vld [vmem:[%s76] sm:$0x1]
    %v99 = vld [vmem:[%s3] sm:$0xff]
    %v100 = vld [vmem:[%s3 + $0x8] sm:$0xff]
    %v101 = vld [vmem:[%s3 + $0x10] sm:$0xff]
    %v102 = vld [vmem:[%s3 + $0x18] sm:$0xff]
    %v103 = vld [vmem:[%s3 + $0x20] sm:$0xff]
    %v104 = vld [vmem:[%s3 + $0x28] sm:$0xff]
    %v105 = vld [vmem:[%s3 + $0x30] sm:$0xff]
    %v106 = vld [vmem:[%s3 + $0x38] sm:$0xff]
    %v107 = vld [vmem:[%s3 + $0x40] sm:$0xff]
    %v108 = vld [vmem:[%s3 + $0x48] sm:$0xff]
    %v109 = vld [vmem:[%s3 + $0x50] sm:$0xff]
    %v110 = vld [vmem:[%s3 + $0x58] sm:$0xff]
    %v111 = vld [vmem:[%s3 + $0x60] sm:$0xff]
    %v112 = vld [vmem:[%s3 + $0x68] sm:$0xff]
    %v113 = vld [vmem:[%s3 + $0x70] sm:$0xff]
    %v114 = vld [vmem:[%s3 + $0x78] sm:$0xff]
    %v115 = vld [vmem:[%s3 + $0x80] sm:$0xff]
    %v116 = vld [vmem:[%s3 + $0x88] sm:$0xff]
    %v117 = vld [vmem:[%s3 + $0x90] sm:$0xff]
    %v118 = vld [vmem:[%s3 + $0x98] sm:$0xff]
    %v119 = vld [vmem:[%s3 + $0xa0] sm:$0xff]
    %v120 = vld [vmem:[%s3 + $0xa8] sm:$0xff]
    %v121 = vld [vmem:[%s3 + $0xb0] sm:$0xff]
    %v122 = vld [vmem:[%s3 + $0xb8] sm:$0xff]
    %v123 = vld [vmem:[%s3 + $0xc0] sm:$0xff]
    %v124 = vld [vmem:[%s3 + $0xc8] sm:$0xff]
    %v125 = vld [vmem:[%s3 + $0xd0] sm:$0xff]
    %v126 = vld [vmem:[%s3 + $0xd8] sm:$0xff]
    %v127 = vld [vmem:[%s3 + $0xe0] sm:$0xff]
    %v128 = vld [vmem:[%s3 + $0xe8] sm:$0xff]
    %v129 = vld [vmem:[%s3 + $0xf0] sm:$0xff]
    %v130 = vld [vmem:[%s3 + $0xf8] sm:$0xff]
    %131 = vmatprep.subr.mxu0 %v130
    %132 = vmatpush1.msra.mxu0 %v129
    %133 = vmatprep.subr.mxu0 %v128
    %134 = vmatpush1.msra.mxu0 %v127
    %135 = vmatprep.subr.mxu0 %v126
    %136 = vmatpush1.msra.mxu0 %v125
    %137 = vmatprep.subr.mxu0 %v124
    %138 = vmatpush1.msra.mxu0 %v123
    %139 = vmatprep.subr.mxu0 %v122
    %140 = vmatpush1.msra.mxu0 %v121
    %141 = vmatprep.subr.mxu0 %v120
    %142 = vmatpush1.msra.mxu0 %v119
    %143 = vmatprep.subr.mxu0 %v118
    %144 = vmatpush1.msra.mxu0 %v117
    %145 = vmatprep.subr.mxu0 %v116
    %146 = vmatpush1.msra.mxu0 %v115
    %147 = vmatprep.subr.mxu0 %v114
    %148 = vmatpush1.msra.mxu0 %v113
    %149 = vmatprep.subr.mxu0 %v112
    %150 = vmatpush1.msra.mxu0 %v111
    %151 = vmatprep.subr.mxu0 %v110
    %152 = vmatpush1.msra.mxu0 %v109
    %153 = vmatprep.subr.mxu0 %v108
    %154 = vmatpush1.msra.mxu0 %v107
    %155 = vmatprep.subr.mxu0 %v106
    %156 = vmatpush1.msra.mxu0 %v105
    %157 = vmatprep.subr.mxu0 %v104
    %158 = vmatpush1.msra.mxu0 %v103
    %159 = vmatprep.subr.mxu0 %v102
    %160 = vmatpush1.msra.mxu0 %v101
    %161 = vmatprep.subr.mxu0 %v100
    %162 = vmatpush1.msra.mxu0 %v99
    %163 = vmatprep.subr.mxu0 0.0
    %164 = vmatpush2.msra.mxu0 0.0
    %165 = vmatprep.subr.mxu0 0.0
    %166 = vmatpush2.msra.mxu0 0.0
    %167 = vmatprep.subr.mxu0 0.0
    %168 = vmatpush2.msra.mxu0 0.0
    %169 = vmatprep.subr.mxu0 0.0
    %170 = vmatpush2.msra.mxu0 0.0
    %171 = vmatprep.subr.mxu0 0.0
    %172 = vmatpush2.msra.mxu0 0.0
    %173 = vmatprep.subr.mxu0 0.0
    %174 = vmatpush2.msra.mxu0 0.0
    %175 = vmatprep.subr.mxu0 0.0
    %176 = vmatpush2.msra.mxu0 0.0
    %177 = vmatprep.subr.mxu0 0.0
    %178 = vmatpush2.msra.mxu0 0.0
    %179 = vmatprep.subr.mxu0 0.0
    %180 = vmatpush2.msra.mxu0 0.0
    %181 = vmatprep.subr.mxu0 0.0
    %182 = vmatpush2.msra.mxu0 0.0
    %183 = vmatprep.subr.mxu0 0.0
    %184 = vmatpush2.msra.mxu0 0.0
    %185 = vmatprep.subr.mxu0 0.0
    %186 = vmatpush2.msra.mxu0 0.0
    %187 = vmatprep.subr.mxu0 0.0
    %188 = vmatpush2.msra.mxu0 0.0
    %189 = vmatprep.subr.mxu0 0.0
    %190 = vmatpush2.msra.mxu0 0.0
    %191 = vmatprep.subr.mxu0 0.0
    %192 = vmatpush2.msra.mxu0 0.0
    %193 = vmatprep.subr.mxu0 0.0
    %194 = vmatpush2.msra.mxu0 0.0
    %195 = vmatprep.mubr.f32.mxu0 0.0
    %196 = vmatmul.mubr.f32.gmra.mxu0 %v98
    %v197 = vpop.f32.mrf.mxu0
    %v198 = vadd.f32 0.0, %v197
    %v199 = vpop.f32.mrf.mxu0
    %v200 = vadd.f32 0.0, %v199
    %201 = vdwg.mxu0
    %v202 = vld [vmem:[%s81] sm:$0x1]
    %v203 = vld [vmem:[#allocation5] sm:$0xff]
    %v204 = vld [vmem:[#allocation5 + $0x8] sm:$0xff]
    %v205 = vld [vmem:[#allocation5 + $0x10] sm:$0xff]
    %v206 = vld [vmem:[#allocation5 + $0x18] sm:$0xff]
    %v207 = vld [vmem:[#allocation5 + $0x20] sm:$0xff]
    %v208 = vld [vmem:[#allocation5 + $0x28] sm:$0xff]
    %v209 = vld [vmem:[#allocation5 + $0x30] sm:$0xff]
    %v210 = vld [vmem:[#allocation5 + $0x38] sm:$0xff]
    %v211 = vld [vmem:[#allocation5 + $0x40] sm:$0xff]
    %v212 = vld [vmem:[#allocation5 + $0x48] sm:$0xff]
    %v213 = vld [vmem:[#allocation5 + $0x50] sm:$0xff]
    %v214 = vld [vmem:[#allocation5 + $0x58] sm:$0xff]
    %v215 = vld [vmem:[#allocation5 + $0x60] sm:$0xff]
    %v216 = vld [vmem:[#allocation5 + $0x68] sm:$0xff]
    %v217 = vld [vmem:[#allocation5 + $0x70] sm:$0xff]
    %v218 = vld [vmem:[#allocation5 + $0x78] sm:$0xff]
    %v219 = vld [vmem:[#allocation5 + $0x80] sm:$0xff]
    %v220 = vld [vmem:[#allocation5 + $0x88] sm:$0xff]
    %v221 = vld [vmem:[#allocation5 + $0x90] sm:$0xff]
    %v222 = vld [vmem:[#allocation5 + $0x98] sm:$0xff]
    %v223 = vld [vmem:[#allocation5 + $0xa0] sm:$0xff]
    %v224 = vld [vmem:[#allocation5 + $0xa8] sm:$0xff]
    %v225 = vld [vmem:[#allocation5 + $0xb0] sm:$0xff]
    %v226 = vld [vmem:[#allocation5 + $0xb8] sm:$0xff]
    %v227 = vld [vmem:[#allocation5 + $0xc0] sm:$0xff]
    %v228 = vld [vmem:[#allocation5 + $0xc8] sm:$0xff]
    %v229 = vld [vmem:[#allocation5 + $0xd0] sm:$0xff]
    %v230 = vld [vmem:[#allocation5 + $0xd8] sm:$0xff]
    %v231 = vld [vmem:[#allocation5 + $0xe0] sm:$0xff]
    %v232 = vld [vmem:[#allocation5 + $0xe8] sm:$0xff]
    %v233 = vld [vmem:[#allocation5 + $0xf0] sm:$0xff]
    %v234 = vld [vmem:[#allocation5 + $0xf8] sm:$0xff]
    %235 = vmatprep.subr.mxu0 %v234
    %236 = vmatpush1.msra.mxu0 %v233
    %237 = vmatprep.subr.mxu0 %v232
    %238 = vmatpush1.msra.mxu0 %v231
    %239 = vmatprep.subr.mxu0 %v230
    %240 = vmatpush1.msra.mxu0 %v229
    %241 = vmatprep.subr.mxu0 %v228
    %242 = vmatpush1.msra.mxu0 %v227
    %243 = vmatprep.subr.mxu0 %v226
    %244 = vmatpush1.msra.mxu0 %v225
    %245 = vmatprep.subr.mxu0 %v224
    %246 = vmatpush1.msra.mxu0 %v223
    %247 = vmatprep.subr.mxu0 %v222
    %248 = vmatpush1.msra.mxu0 %v221
    %249 = vmatprep.subr.mxu0 %v220
    %250 = vmatpush1.msra.mxu0 %v219
    %251 = vmatprep.subr.mxu0 %v218
    %252 = vmatpush1.msra.mxu0 %v217
    %253 = vmatprep.subr.mxu0 %v216
    %254 = vmatpush1.msra.mxu0 %v215
    %255 = vmatprep.subr.mxu0 %v214
    %256 = vmatpush1.msra.mxu0 %v213
    %257 = vmatprep.subr.mxu0 %v212
    %258 = vmatpush1.msra.mxu0 %v211
    %259 = vmatprep.subr.mxu0 %v210
    %260 = vmatpush1.msra.mxu0 %v209
    %261 = vmatprep.subr.mxu0 %v208
    %262 = vmatpush1.msra.mxu0 %v207
    %263 = vmatprep.subr.mxu0 %v206
    %264 = vmatpush1.msra.mxu0 %v205
    %265 = vmatprep.subr.mxu0 %v204
    %266 = vmatpush1.msra.mxu0 %v203
    %267 = vmatprep.subr.mxu0 0.0
    %268 = vmatpush2.msra.mxu0 0.0
    %269 = vmatprep.subr.mxu0 0.0
    %270 = vmatpush2.msra.mxu0 0.0
    %271 = vmatprep.subr.mxu0 0.0
    %272 = vmatpush2.msra.mxu0 0.0
    %273 = vmatprep.subr.mxu0 0.0
    %274 = vmatpush2.msra.mxu0 0.0
    %275 = vmatprep.subr.mxu0 0.0
    %276 = vmatpush2.msra.mxu0 0.0
    %277 = vmatprep.subr.mxu0 0.0
    %278 = vmatpush2.msra.mxu0 0.0
    %279 = vmatprep.subr.mxu0 0.0
    %280 = vmatpush2.msra.mxu0 0.0
    %281 = vmatprep.subr.mxu0 0.0
    %282 = vmatpush2.msra.mxu0 0.0
    %283 = vmatprep.subr.mxu0 0.0
    %284 = vmatpush2.msra.mxu0 0.0
    %285 = vmatprep.subr.mxu0 0.0
    %286 = vmatpush2.msra.mxu0 0.0
    %287 = vmatprep.subr.mxu0 0.0
    %288 = vmatpush2.msra.mxu0 0.0
    %289 = vmatprep.subr.mxu0 0.0
    %290 = vmatpush2.msra.mxu0 0.0
    %291 = vmatprep.subr.mxu0 0.0
    %292 = vmatpush2.msra.mxu0 0.0
    %293 = vmatprep.subr.mxu0 0.0
    %294 = vmatpush2.msra.mxu0 0.0
    %295 = vmatprep.subr.mxu0 0.0
    %296 = vmatpush2.msra.mxu0 0.0
    %297 = vmatprep.subr.mxu0 0.0
    %298 = vmatpush2.msra.mxu0 0.0
    %299 = vmatprep.mubr.f32.mxu0 0.0
    %300 = vmatmul.mubr.f32.gmra.mxu0 %v202
    %v301 = vpop.f32.mrf.mxu0
    %v302 = vadd.f32 0.0, %v301
    %v303 = vpop.f32.mrf.mxu0
    %v304 = vadd.f32 0.0, %v303
    %305 = vdwg.mxu0
    %v306 = vadd.f32 %v198, %v302
    %v307 = vadd.f32 %v200, %v304
    %v309 = vlaneseq
    %v310 = vshrl.u32 %v309, 7
    %v311 = vsub.s32 0, %v310
    %v312 = vrot.slane %v97, %v311
    %v313 = vlaneseq
    %v314 = vshrl.u32 %v313, 7
    %v315 = vsub.s32 1, %v314
    %v316 = vrot.slane %v97, %v315
    %v319 = vadd.f32 %v306, %v312
    %v320 = vadd.f32 %v307, %v316
    %v321 = vmax.f32 %v319, 0.0
    %v322 = vmax.f32 %v320, 0.0
    %v323 = vld [vmem:[%s86] sm:$0x1]
    %324 = vmatprep.subr.mxu0 %v234
    %325 = vmatpush1.msra.mxu0 %v233
    %326 = vmatprep.subr.mxu0 %v232
    %327 = vmatpush1.msra.mxu0 %v231
    %328 = vmatprep.subr.mxu0 %v230
    %329 = vmatpush1.msra.mxu0 %v229
    %330 = vmatprep.subr.mxu0 %v228
    %331 = vmatpush1.msra.mxu0 %v227
    %332 = vmatprep.subr.mxu0 %v226
    %333 = vmatpush1.msra.mxu0 %v225
    %334 = vmatprep.subr.mxu0 %v224
    %335 = vmatpush1.msra.mxu0 %v223
    %336 = vmatprep.subr.mxu0 %v222
    %337 = vmatpush1.msra.mxu0 %v221
    %338 = vmatprep.subr.mxu0 %v220
    %339 = vmatpush1.msra.mxu0 %v219
    %340 = vmatprep.subr.mxu0 %v218
    %341 = vmatpush1.msra.mxu0 %v217
    %342 = vmatprep.subr.mxu0 %v216
    %343 = vmatpush1.msra.mxu0 %v215
    %344 = vmatprep.subr.mxu0 %v214
    %345 = vmatpush1.msra.mxu0 %v213
    %346 = vmatprep.subr.mxu0 %v212
    %347 = vmatpush1.msra.mxu0 %v211
    %348 = vmatprep.subr.mxu0 %v210
    %349 = vmatpush1.msra.mxu0 %v209
    %350 = vmatprep.subr.mxu0 %v208
    %351 = vmatpush1.msra.mxu0 %v207
    %352 = vmatprep.subr.mxu0 %v206
    %353 = vmatpush1.msra.mxu0 %v205
    %354 = vmatprep.subr.mxu0 %v204
    %355 = vmatpush1.msra.mxu0 %v203
    %356 = vmatprep.subr.mxu0 0.0
    %357 = vmatpush2.msra.mxu0 0.0
    %358 = vmatprep.subr.mxu0 0.0
    %359 = vmatpush2.msra.mxu0 0.0
    %360 = vmatprep.subr.mxu0 0.0
    %361 = vmatpush2.msra.mxu0 0.0
    %362 = vmatprep.subr.mxu0 0.0
    %363 = vmatpush2.msra.mxu0 0.0
    %364 = vmatprep.subr.mxu0 0.0
    %365 = vmatpush2.msra.mxu0 0.0
    %366 = vmatprep.subr.mxu0 0.0
    %367 = vmatpush2.msra.mxu0 0.0
    %368 = vmatprep.subr.mxu0 0.0
    %369 = vmatpush2.msra.mxu0 0.0
    %370 = vmatprep.subr.mxu0 0.0
    %371 = vmatpush2.msra.mxu0 0.0
    %372 = vmatprep.subr.mxu0 0.0
    %373 = vmatpush2.msra.mxu0 0.0
    %374 = vmatprep.subr.mxu0 0.0
    %375 = vmatpush2.msra.mxu0 0.0
    %376 = vmatprep.subr.mxu0 0.0
    %377 = vmatpush2.msra.mxu0 0.0
    %378 = vmatprep.subr.mxu0 0.0
    %379 = vmatpush2.msra.mxu0 0.0
    %380 = vmatprep.subr.mxu0 0.0
    %381 = vmatpush2.msra.mxu0 0.0
    %382 = vmatprep.subr.mxu0 0.0
    %383 = vmatpush2.msra.mxu0 0.0
    %384 = vmatprep.subr.mxu0 0.0
    %385 = vmatpush2.msra.mxu0 0.0
    %386 = vmatprep.subr.mxu0 0.0
    %387 = vmatpush2.msra.mxu0 0.0
    %388 = vmatprep.mubr.f32.mxu0 0.0
    %389 = vmatmul.mubr.f32.gmra.mxu0 %v323
    %v390 = vpop.f32.mrf.mxu0
    %v391 = vadd.f32 0.0, %v390
    %v392 = vpop.f32.mrf.mxu0
    %v393 = vadd.f32 0.0, %v392
    %394 = vdwg.mxu0
    %v395 = vadd.f32 %v198, %v391
    %v396 = vadd.f32 %v200, %v393
    %v397 = vadd.f32 %v395, %v312
    %v398 = vadd.f32 %v396, %v316
    %v399 = vmax.f32 %v397, 0.0
    %v400 = vmax.f32 %v398, 0.0
    %v401 = vld [vmem:[%s6] sm:$0xff]
    %v402 = vld [vmem:[%s6 + $0x8] sm:$0xff]
    %v403 = vld [vmem:[%s6 + $0x10] sm:$0xff]
    %v404 = vld [vmem:[%s6 + $0x18] sm:$0xff]
    %v405 = vld [vmem:[%s6 + $0x20] sm:$0xff]
    %v406 = vld [vmem:[%s6 + $0x28] sm:$0xff]
    %v407 = vld [vmem:[%s6 + $0x30] sm:$0xff]
    %v408 = vld [vmem:[%s6 + $0x38] sm:$0xff]
    %v409 = vld [vmem:[%s6 + $0x40] sm:$0xff]
    %v410 = vld [vmem:[%s6 + $0x48] sm:$0xff]
    %v411 = vld [vmem:[%s6 + $0x50] sm:$0xff]
    %v412 = vld [vmem:[%s6 + $0x58] sm:$0xff]
    %v413 = vld [vmem:[%s6 + $0x60] sm:$0xff]
    %v414 = vld [vmem:[%s6 + $0x68] sm:$0xff]
    %v415 = vld [vmem:[%s6 + $0x70] sm:$0xff]
    %v416 = vld [vmem:[%s6 + $0x78] sm:$0xff]
    %v417 = vld [vmem:[%s6 + $0x80] sm:$0xff]
    %v418 = vld [vmem:[%s6 + $0x88] sm:$0xff]
    %v419 = vld [vmem:[%s6 + $0x90] sm:$0xff]
    %v420 = vld [vmem:[%s6 + $0x98] sm:$0xff]
    %v421 = vld [vmem:[%s6 + $0xa0] sm:$0xff]
    %v422 = vld [vmem:[%s6 + $0xa8] sm:$0xff]
    %v423 = vld [vmem:[%s6 + $0xb0] sm:$0xff]
    %v424 = vld [vmem:[%s6 + $0xb8] sm:$0xff]
    %v425 = vld [vmem:[%s6 + $0xc0] sm:$0xff]
    %v426 = vld [vmem:[%s6 + $0xc8] sm:$0xff]
    %v427 = vld [vmem:[%s6 + $0xd0] sm:$0xff]
    %v428 = vld [vmem:[%s6 + $0xd8] sm:$0xff]
    %v429 = vld [vmem:[%s6 + $0xe0] sm:$0xff]
    %v430 = vld [vmem:[%s6 + $0xe8] sm:$0xff]
    %v431 = vld [vmem:[%s6 + $0xf0] sm:$0xff]
    %v432 = vld [vmem:[%s6 + $0xf8] sm:$0xff]
    %433 = vmatprep.subr.mxu0 0.0
    %434 = vmatpush1.msra.mxu0 %v416
    %435 = vmatprep.subr.mxu0 0.0
    %436 = vmatpush1.msra.mxu0 %v415
    %437 = vmatprep.subr.mxu0 0.0
    %438 = vmatpush1.msra.mxu0 %v414
    %439 = vmatprep.subr.mxu0 0.0
    %440 = vmatpush1.msra.mxu0 %v413
    %441 = vmatprep.subr.mxu0 0.0
    %442 = vmatpush1.msra.mxu0 %v412
    %443 = vmatprep.subr.mxu0 0.0
    %444 = vmatpush1.msra.mxu0 %v411
    %445 = vmatprep.subr.mxu0 0.0
    %446 = vmatpush1.msra.mxu0 %v410
    %447 = vmatprep.subr.mxu0 0.0
    %448 = vmatpush1.msra.mxu0 %v409
    %449 = vmatprep.subr.mxu0 0.0
    %450 = vmatpush1.msra.mxu0 %v408
    %451 = vmatprep.subr.mxu0 0.0
    %452 = vmatpush1.msra.mxu0 %v407
    %453 = vmatprep.subr.mxu0 0.0
    %454 = vmatpush1.msra.mxu0 %v406
    %455 = vmatprep.subr.mxu0 0.0
    %456 = vmatpush1.msra.mxu0 %v405
    %457 = vmatprep.subr.mxu0 0.0
    %458 = vmatpush1.msra.mxu0 %v404
    %459 = vmatprep.subr.mxu0 0.0
    %460 = vmatpush1.msra.mxu0 %v403
    %461 = vmatprep.subr.mxu0 0.0
    %462 = vmatpush1.msra.mxu0 %v402
    %463 = vmatprep.subr.mxu0 0.0
    %464 = vmatpush1.msra.mxu0 %v401
    %465 = vmatprep.subr.mxu0 0.0
    %466 = vmatpush2.msra.mxu0 %v432
    %467 = vmatprep.subr.mxu0 0.0
    %468 = vmatpush2.msra.mxu0 %v431
    %469 = vmatprep.subr.mxu0 0.0
    %470 = vmatpush2.msra.mxu0 %v430
    %471 = vmatprep.subr.mxu0 0.0
    %472 = vmatpush2.msra.mxu0 %v429
    %473 = vmatprep.subr.mxu0 0.0
    %474 = vmatpush2.msra.mxu0 %v428
    %475 = vmatprep.subr.mxu0 0.0
    %476 = vmatpush2.msra.mxu0 %v427
    %477 = vmatprep.subr.mxu0 0.0
    %478 = vmatpush2.msra.mxu0 %v426
    %479 = vmatprep.subr.mxu0 0.0
    %480 = vmatpush2.msra.mxu0 %v425
    %481 = vmatprep.subr.mxu0 0.0
    %482 = vmatpush2.msra.mxu0 %v424
    %483 = vmatprep.subr.mxu0 0.0
    %484 = vmatpush2.msra.mxu0 %v423
    %485 = vmatprep.subr.mxu0 0.0
    %486 = vmatpush2.msra.mxu0 %v422
    %487 = vmatprep.subr.mxu0 0.0
    %488 = vmatpush2.msra.mxu0 %v421
    %489 = vmatprep.subr.mxu0 0.0
    %490 = vmatpush2.msra.mxu0 %v420
    %491 = vmatprep.subr.mxu0 0.0
    %492 = vmatpush2.msra.mxu0 %v419
    %493 = vmatprep.subr.mxu0 0.0
    %494 = vmatpush2.msra.mxu0 %v418
    %495 = vmatprep.subr.mxu0 0.0
    %496 = vmatpush2.msra.mxu0 %v417
    %497 = vmatprep.mubr.f32.mxu0 %v322
    %498 = vmatmul.mubr.f32.gmra.mxu0 %v321
    %v499 = vpop.f32.mrf.mxu0
    %v500 = vadd.f32 0.0, %v499
    %v501 = vpop.f32.mrf.mxu0
    %502 = vdwg.mxu0
    %v503 = vld [vmem:[#allocation4] sm:$0x1]
    %505 = vset.pattern.permute.xlu0 0
    %506 = vperm.xlu0 %505, %v503
    %v507 = vpop.permute.xlu0 %506
    %v509 = vlaneseq
    %v510 = vshrl.u32 %v509, 7
    %v511 = vsub.s32 0, %v510
    %v512 = vrot.slane %v507, %v511
    %513 = vmatprep.subr.mxu0 0.0
    %514 = vmatpush1.msra.mxu0 %v416
    %515 = vmatprep.subr.mxu0 0.0
    %516 = vmatpush1.msra.mxu0 %v415
    %517 = vmatprep.subr.mxu0 0.0
    %518 = vmatpush1.msra.mxu0 %v414
    %519 = vmatprep.subr.mxu0 0.0
    %520 = vmatpush1.msra.mxu0 %v413
    %521 = vmatprep.subr.mxu0 0.0
    %522 = vmatpush1.msra.mxu0 %v412
    %523 = vmatprep.subr.mxu0 0.0
    %524 = vmatpush1.msra.mxu0 %v411
    %525 = vmatprep.subr.mxu0 0.0
    %526 = vmatpush1.msra.mxu0 %v410
    %527 = vmatprep.subr.mxu0 0.0
    %528 = vmatpush1.msra.mxu0 %v409
    %529 = vmatprep.subr.mxu0 0.0
    %530 = vmatpush1.msra.mxu0 %v408
    %531 = vmatprep.subr.mxu0 0.0
    %532 = vmatpush1.msra.mxu0 %v407
    %533 = vmatprep.subr.mxu0 0.0
    %534 = vmatpush1.msra.mxu0 %v406
    %535 = vmatprep.subr.mxu0 0.0
    %536 = vmatpush1.msra.mxu0 %v405
    %537 = vmatprep.subr.mxu0 0.0
    %538 = vmatpush1.msra.mxu0 %v404
    %539 = vmatprep.subr.mxu0 0.0
    %540 = vmatpush1.msra.mxu0 %v403
    %541 = vmatprep.subr.mxu0 0.0
    %542 = vmatpush1.msra.mxu0 %v402
    %543 = vmatprep.subr.mxu0 0.0
    %544 = vmatpush1.msra.mxu0 %v401
    %545 = vmatprep.subr.mxu0 0.0
    %546 = vmatpush2.msra.mxu0 %v432
    %547 = vmatprep.subr.mxu0 0.0
    %548 = vmatpush2.msra.mxu0 %v431
    %549 = vmatprep.subr.mxu0 0.0
    %550 = vmatpush2.msra.mxu0 %v430
    %551 = vmatprep.subr.mxu0 0.0
    %552 = vmatpush2.msra.mxu0 %v429
    %553 = vmatprep.subr.mxu0 0.0
    %554 = vmatpush2.msra.mxu0 %v428
    %555 = vmatprep.subr.mxu0 0.0
    %556 = vmatpush2.msra.mxu0 %v427
    %557 = vmatprep.subr.mxu0 0.0
    %558 = vmatpush2.msra.mxu0 %v426
    %559 = vmatprep.subr.mxu0 0.0
    %560 = vmatpush2.msra.mxu0 %v425
    %561 = vmatprep.subr.mxu0 0.0
    %562 = vmatpush2.msra.mxu0 %v424
    %563 = vmatprep.subr.mxu0 0.0
    %564 = vmatpush2.msra.mxu0 %v423
    %565 = vmatprep.subr.mxu0 0.0
    %566 = vmatpush2.msra.mxu0 %v422
    %567 = vmatprep.subr.mxu0 0.0
    %568 = vmatpush2.msra.mxu0 %v421
    %569 = vmatprep.subr.mxu0 0.0
    %570 = vmatpush2.msra.mxu0 %v420
    %571 = vmatprep.subr.mxu0 0.0
    %572 = vmatpush2.msra.mxu0 %v419
    %573 = vmatprep.subr.mxu0 0.0
    %574 = vmatpush2.msra.mxu0 %v418
    %575 = vmatprep.subr.mxu0 0.0
    %576 = vmatpush2.msra.mxu0 %v417
    %577 = vmatprep.mubr.f32.mxu0 %v400
    %578 = vmatmul.mubr.f32.gmra.mxu0 %v399
    %v579 = vpop.f32.mrf.mxu0
    %v580 = vadd.f32 %v512, %v579
    %v581 = vpop.f32.mrf.mxu0
    %582 = vdwg.mxu0
    %v583 = vmul.f32 %v580, 1.442695
    %v584 = vpow.pop %v583
    %p585 = scmp.ne.s32.totalorder %s95, 0
    // Predicated region
    $region42: #{tpu_custom_call.1} parent=1 // pred_check
      %p586 = pneg %p585
    $region43: #{tpu_custom_call.1} parent=1 // pred_check_branch
      %588 = sbr.rel (%p586) target = $region45
    $region44: #{tpu_custom_call.1} parent=1 // pred_region
      %v589 = vld [vmem:[#allocation2] sm:$0x1]
      %v590 = vadd.f32 %v500, 0.0
      %v591 = vadd.f32 %v589, %v590
      %vm592 = vcmask 57344
      %593 = vst.msk [vmem:[#allocation2] sm:$0x1] %vm592, %v591
      %v594 = vld [vmem:[#allocation3] sm:$0x1]
      %v595 = vadd.f32 %v584, 0.0
      %v596 = vadd.f32 %v594, %v595
      %597 = vst.msk [vmem:[#allocation3] sm:$0x1] %vm592, %v596
    $region45: #{tpu_custom_call.1} parent=1 // pred_fallthru
      _
    // Predicated region
    $region46: #{tpu_custom_call.1} parent=1 // pred_check
      %p598 = pneg %p96
    $region47: #{tpu_custom_call.1} parent=1 // pred_check_branch
      %600 = sbr.rel (%p598) target = $region49
    $region48: #{tpu_custom_call.1} parent=1 // pred_region
      %v601 = vlaneseq
      %v602 = vshrl.u32 %v601, 7
      %v603 = vlaneseq
      %v604 = vand.u32 %v603, 127
      %v605 = vstv %s95
      %v606 = vadd.s32 %v605, %v602
      %v607 = vmul.u32 %v606, 8
      %v608 = vadd.s32 %v607, %v604
      %vm609 = vcmp.lt.s32.totalorder %v608, 8
      %v610 = vld [vmem:[#allocation2] sm:$0x1]
      %v611 = vsel %vm609, %v500, 0.0
      %v612 = vadd.f32 %v611, 0.0
      %v613 = vadd.f32 %v610, %v612
      %vm614 = vcmask 57344
      %615 = vst.msk [vmem:[#allocation2] sm:$0x1] %vm614, %v613
      %v616 = vld [vmem:[#allocation3] sm:$0x1]
      %v617 = vsel %vm609, %v584, 0.0
      %v618 = vadd.f32 %v617, 0.0
      %v619 = vadd.f32 %v616, %v618
      %620 = vst.msk [vmem:[#allocation3] sm:$0x1] %vm614, %v619
    $region49: #{tpu_custom_call.1} parent=1 // pred_fallthru
      _
    // Predicated region
    $region50: #{tpu_custom_call.1} parent=1 // pred_check
      %p621 = pneg %p88
    $region51: #{tpu_custom_call.1} parent=1 // pred_check_branch
      %623 = sbr.rel (%p621) target = $region53
    $region52: #{tpu_custom_call.1} parent=1 // pred_region
      %v624 = vld [vmem:[#allocation2] sm:$0x1]
      %vm625 = vcmask 57344
      %v626 = vsel %vm625, %v624, 0.0
      %627 = vadd.xlane.f32.xlu0 %v626
      %v628 = vpop.xlane.xlu0 %627
      %v629 = vrot.slane %v628, 4
      %v630 = vadd.f32 %v628, %v629
      %v631 = vrot.slane %v630, 2
      %v632 = vadd.f32 %v630, %v631
      %v633 = vrot.slane %v632, 1
      %v634 = vadd.f32 %v632, %v633
      %s635 = vtos %v634
      %v636 = vld [vmem:[#allocation3] sm:$0x1]
      %v637 = vsel %vm625, %v636, 0.0
      %638 = vadd.xlane.f32.xlu0 %v637
      %v639 = vpop.xlane.xlu0 %638
      %v640 = vrot.slane %v639, 4
      %v641 = vadd.f32 %v639, %v640
      %v642 = vrot.slane %v641, 2
      %v643 = vadd.f32 %v641, %v642
      %v644 = vrot.slane %v643, 1
      %v645 = vadd.f32 %v643, %v644
      %s646 = vtos %v645
      %v647 = vlaneseq
      %v648 = vshrl.u32 %v647, 7
      %v649 = vlaneseq
      %v650 = vand.u32 %v649, 127
      %vm651 = vcmp.eq.s32.totalorder %v648, 0
      %vm652 = vcmp.eq.s32.totalorder %v650, 0
      %vm653 = vmand %vm651, %vm652
      %vm654 = vcmp.eq.s32.totalorder %v650, 1
      %vm655 = vmand %vm651, %vm654
      %v656 = vstv %s646
      %v657 = vsel %vm655, %v656, 0.0
      %v658 = vstv %s635
      %v659 = vsel %vm653, %v658, %v657
      %660 = vst [vmem:[#allocation8] sm:$0xff] %v659
    $region53: #{tpu_custom_call.1} parent=1 // pred_fallthru
      _
    // Predicated region
    $region54: #{tpu_custom_call.1} parent=1 // pred_check
      _
    $region55: #{tpu_custom_call.1} parent=1 // pred_check_branch
      %662 = sbr.rel (0) target = $region57
    $region56: #{tpu_custom_call.1} parent=1 // pred_region
      %s664 = ssub.s32 128, 128
      %665 = vsyncadd [#allocation7], %s664
      %s667 = sshll.u32 [#allocation8], 4
      %s668 = int_to_ptr.vmem [resolvable:$true] %s667
      %670 = dma.vmem_to_hbm [thread:$0]  %s668, 128, %s8, [#allocation7]
    $region57: #{tpu_custom_call.1} parent=1 // pred_fallthru
      _
    // Predicated region
    $region58: #{tpu_custom_call.1} parent=1 // pred_check
      _
    $region59: #{tpu_custom_call.1} parent=1 // pred_check_branch
      %672 = sbr.rel (0) target = $region61
    $region60: #{tpu_custom_call.1} parent=1 // pred_region
      %673 = dma.done [#allocation7], 128
    $region61: #{tpu_custom_call.1} parent=1 // pred_fallthru
      _
    %674 = vsyncpa [#allocation6], 1
    %675 = vsyncpa [#allocation7], 1

</llo_original>
